<compile_context>
chip_gen: v7x
topology: tpu7x:2x2x1
jax: 0.10.0
libtpu: 0.0.40
codegen_flags: <defaults>
</compile_context>

<pallas_src>
import jax
import jax.numpy as jnp
from jax.experimental import pallas as pl
from jax.experimental.pallas import tpu as pltpu

O_DIM = 1 + 1 + 6 * 5 + 3          # 35
HIDDEN_DIMS = (64, 64)
STATE_DIM = 64
OUT_DIM = 2 * STATE_DIM            # 128  (lane-dense output)
LAMBDA_S = 1.5


def _encoder_kernel(x_ref, w1_ref, b1_ref, w2_ref, b2_ref, w3_ref, b3_ref,
                    o_ref):
    """Fused MLP + split state activation for one batch tile.

    x is cast to the weight dtype here (no wrapper astype pass).  Matmuls
    accumulate in f32 on the MXU; bias add / ReLU are carried in the weight
    dtype (small VMEM scratch); the sigmoid epilogue runs in f32 and the final
    store narrows to o_ref.dtype.  Dropout = identity (eval mode).
    """
    cdt = w1_ref.dtype
    x = x_ref[...].astype(cdt)                                     # [tb, 35]

    # hidden layer 1: Linear -> ReLU
    h1 = jnp.dot(x, w1_ref[...], preferred_element_type=jnp.float32)
    h1 = jnp.maximum(h1 + b1_ref[...], 0.0).astype(cdt)            # [tb, 64]

    # hidden layer 2: Linear -> ReLU
    h2 = jnp.dot(h1, w2_ref[...], preferred_element_type=jnp.float32)
    h2 = jnp.maximum(h2 + b2_ref[...], 0.0).astype(cdt)            # [tb, 64]

    # fused output layer: one 128-wide matmul, then lane-masked split
    # activation (mean lanes pass through, std lanes get lambda_s * sigmoid).
    y = jnp.dot(h2, w3_ref[...], preferred_element_type=jnp.float32)
    y = y + b3_ref[...]                                            # [tb, 128]
    col = jax.lax.broadcasted_iota(jnp.int32, (1, OUT_DIM), 1)     # broadcasts
    out = jnp.where(col < STATE_DIM, y, LAMBDA_S * jax.nn.sigmoid(y))

    o_ref[...] = out.astype(o_ref.dtype)                           # [tb, 128]


def _round_up(n, m):
    return ((n + m - 1) // m) * m


def _choose_tile_b(B, tile_b, out_itemsize):
    """Batch tile: big enough to amortize per-step overhead, small enough for
    v5e's 16 MiB scoped VMEM / v7x's 64 MiB physical VMEM, and (when B allows)
    at least 2 grid steps so both v7x TensorCores get work."""
    if tile_b is None:
        tile_b = 2048 if out_itemsize >= 4 else 4096
    tile_b = max(16, int(tile_b))
    if B <= 32:
        return B                      # single full-extent block (always legal)
    # keep >= 2 grid steps so the "parallel" axis can shard across 2 TCs
    tile_b = min(tile_b, _round_up(pl.cdiv(B, 2), 16))
    return _round_up(min(tile_b, B), 16)


def encoder_forward(x, params, *, tile_b=None, out_dtype=None):
    """x: [B, o_dim] (kept in its HBM dtype; cast happens inside the kernel).
    params: (w1, b1, w2, b2, w3, b3) — weights define the compute dtype
    (convert ONCE with init_params/cast_params, not per call).
    Returns [B, 2*state_dim] = concat(mean, std) in `out_dtype`
    (default: the weight dtype, i.e. bf16 for default params)."""
    w1, b1, w2, b2, w3, b3 = params
    assert x.ndim == 2 and x.shape[1] == O_DIM, x.shape
    B = x.shape[0]
    if out_dtype is None:
        out_dtype = w1.dtype
    out_dtype = jnp.dtype(out_dtype)

    tile_b = _choose_tile_b(B, tile_b, out_dtype.itemsize)
    grid = (pl.cdiv(B, tile_b),)   # ragged last tile handled by Pallas masking

    weight_bytes = sum(int(a.size) * a.dtype.itemsize for a in params)
    cost = pl.CostEstimate(
        flops=2 * B * (O_DIM * HIDDEN_DIMS[0]
                       + HIDDEN_DIMS[0] * HIDDEN_DIMS[1]
                       + HIDDEN_DIMS[1] * OUT_DIM),
        transcendentals=B * STATE_DIM,
        bytes_accessed=B * (O_DIM * x.dtype.itemsize
                            + OUT_DIM * out_dtype.itemsize) + weight_bytes,
    )

    const = lambda i: (0, 0)   # weights/biases: DMA'd once, stay VMEM-resident
    return pl.pallas_call(
        _encoder_kernel,
        out_shape=jax.ShapeDtypeStruct((B, OUT_DIM), out_dtype),
        grid=grid,
        in_specs=[
            pl.BlockSpec((tile_b, O_DIM), lambda i: (i, 0)),   # streamed x tiles
            pl.BlockSpec(w1.shape, const),
            pl.BlockSpec(b1.shape, const),
            pl.BlockSpec(w2.shape, const),
            pl.BlockSpec(b2.shape, const),
            pl.BlockSpec(w3.shape, const),
            pl.BlockSpec(b3.shape, const),
        ],
        out_specs=pl.BlockSpec((tile_b, OUT_DIM), lambda i: (i, 0)),
        compiler_params=pltpu.CompilerParams(
            dimension_semantics=("parallel",)),
        cost_estimate=cost,
    )(x, w1, b1, w2, b2, w3, b3)


def _xavier_uniform(key, fan_in, fan_out, gain):
    bound = gain * float(jnp.sqrt(6.0 / (fan_in + fan_out)))
    # stored as (in, out) so the kernel does x @ W
    return jax.random.uniform(key, (fan_in, fan_out), jnp.float32, -bound, bound)


def init_params(key, dtype=jnp.bfloat16):
    """Weights stored (in, out) in `dtype` (bf16 default halves weight DMA and
    enables the bf16 MXU path / narrow output); biases stay f32."""
    relu_gain = float(jnp.sqrt(2.0))   # nn.init.calculate_gain('relu')
    linear_gain = 1.0                  # nn.init.calculate_gain('linear')
    k1, k2, k3 = jax.random.split(key, 3)

    w1 = _xavier_uniform(k1, O_DIM, HIDDEN_DIMS[0], relu_gain).astype(dtype)
    b1 = jnp.zeros((1, HIDDEN_DIMS[0]), jnp.float32)
    w2 = _xavier_uniform(k2, HIDDEN_DIMS[0], HIDDEN_DIMS[1], relu_gain).astype(dtype)
    b2 = jnp.zeros((1, HIDDEN_DIMS[1]), jnp.float32)
    # output layer kept as one (hidden, 2*state_dim) weight (fused matmul)
    w3 = _xavier_uniform(k3, HIDDEN_DIMS[1], OUT_DIM, linear_gain).astype(dtype)
    b3 = jnp.zeros((1, OUT_DIM), jnp.float32)
    return (w1, b1, w2, b2, w3, b3)


def cast_params(params, dtype):
    """One-time weight conversion (do at init time, never per forward call)."""
    w1, b1, w2, b2, w3, b3 = params
    return (w1.astype(dtype), b1, w2.astype(dtype), b2, w3.astype(dtype), b3)


def encoder_reference(x, params):
    """Pure-JAX f32 reference for correctness checking."""
    w1, b1, w2, b2, w3, b3 = params
    w1 = w1.astype(jnp.float32); w2 = w2.astype(jnp.float32)
    w3 = w3.astype(jnp.float32)
    h1 = jnp.maximum(x @ w1 + b1, 0.0)
    h2 = jnp.maximum(h1 @ w2 + b2, 0.0)
    y = h2 @ w3 + b3
    mean = y[:, :STATE_DIM]
    std = LAMBDA_S * jax.nn.sigmoid(y[:, STATE_DIM:])
    return jnp.concatenate([mean, std], axis=-1)


if __name__ == "__main__":
    key = jax.random.PRNGKey(0)
    pkey, xkey = jax.random.split(key)

    params_f32 = init_params(pkey, dtype=jnp.float32)
    params_bf16 = cast_params(params_f32, jnp.bfloat16)   # one-time conversion

    B = 40
    x = jax.random.normal(xkey, (B, O_DIM), jnp.float32)

    # 1) strict f32 path, small batch, single full-extent block
    out_f32 = jax.block_until_ready(
        encoder_forward(x[:8], params_f32, out_dtype=jnp.float32))
    ref_small = encoder_reference(x[:8], params_f32)
    assert out_f32.shape == (8, OUT_DIM), out_f32.shape
    assert out_f32.dtype == jnp.float32
    assert jnp.allclose(out_f32, ref_small, atol=1e-5, rtol=1e-5), "f32 mismatch"

    # 2) default bf16 path, multi-step grid with a ragged last tile
    #    (B=40, tile_b=16 -> 3 grid steps, last one masked)
    out_bf16 = jax.block_until_ready(
        encoder_forward(x, params_bf16, tile_b=16))
    ref_all = encoder_reference(x, params_f32)
    assert out_bf16.shape == (B, OUT_DIM), out_bf16.shape
    assert out_bf16.dtype == jnp.bfloat16
    assert jnp.allclose(out_bf16.astype(jnp.float32), ref_all,
                        atol=5e-2, rtol=5e-2), "bf16 mismatch"

    # 3) bf16 weights but f32 output (out_dtype decoupled from compute dtype)
    out_mix = jax.block_until_ready(
        encoder_forward(x, params_bf16, out_dtype=jnp.float32))
    assert out_mix.shape == (B, OUT_DIM) and out_mix.dtype == jnp.float32
    assert jnp.allclose(out_mix, ref_all, atol=5e-2, rtol=5e-2), "mixed mismatch"

    print("KERNEL_OK")
</pallas_src>

<mosaic_0001>
module attributes {stable_mosaic.version = 11 : i64} {
  func.func @_encoder_kernel(%arg0: i32, %arg1: memref<8x35xf32, #tpu.memory_space<vmem>>, %arg2: memref<35x64xf32, #tpu.memory_space<vmem>>, %arg3: memref<1x64xf32, #tpu.memory_space<vmem>>, %arg4: memref<64x64xf32, #tpu.memory_space<vmem>>, %arg5: memref<1x64xf32, #tpu.memory_space<vmem>>, %arg6: memref<64x128xf32, #tpu.memory_space<vmem>>, %arg7: memref<1x128xf32, #tpu.memory_space<vmem>>, %arg8: memref<8x128xf32, #tpu.memory_space<vmem>>) attributes {dimension_semantics = [#tpu.dimension_semantics<parallel>], iteration_bounds = array<i64: 1>, scalar_prefetch = 0 : i64, scratch_operands = 0 : i64, tpu.core_type = #tpu.core_type<tc>, window_params = [{transform_indices = @transform_0, window_bounds = array<i64: 8, 35>}, {pipeline_mode = #tpu.pipeline_mode<synchronous>, transform_indices = @transform_1, window_bounds = array<i64: 35, 64>}, {pipeline_mode = #tpu.pipeline_mode<synchronous>, transform_indices = @transform_2, window_bounds = array<i64: 1, 64>}, {pipeline_mode = #tpu.pipeline_mode<synchronous>, transform_indices = @transform_3, window_bounds = array<i64: 64, 64>}, {pipeline_mode = #tpu.pipeline_mode<synchronous>, transform_indices = @transform_4, window_bounds = array<i64: 1, 64>}, {pipeline_mode = #tpu.pipeline_mode<synchronous>, transform_indices = @transform_5, window_bounds = array<i64: 64, 128>}, {pipeline_mode = #tpu.pipeline_mode<synchronous>, transform_indices = @transform_6, window_bounds = array<i64: 1, 128>}, {transform_indices = @transform_7, window_bounds = array<i64: 8, 128>}]} {
    %c0 = arith.constant 0 : index
    %c0_0 = arith.constant 0 : index
    %0 = vector.load %arg1[%c0, %c0_0] : memref<8x35xf32, #tpu.memory_space<vmem>>, vector<8x35xf32>
    %c0_1 = arith.constant 0 : index
    %c0_2 = arith.constant 0 : index
    %1 = vector.load %arg2[%c0_1, %c0_2] : memref<35x64xf32, #tpu.memory_space<vmem>>, vector<35x64xf32>
    %cst = arith.constant dense<0.000000e+00> : vector<8x64xf32>
    %2 = tpu.matmul %0, %1, %cst {dimension_numbers = #tpu.dot_dimension_numbers<[1], [0], [0], [1], [0, 0, 1, 1], [], []>} : vector<8x35xf32>, vector<35x64xf32>, vector<8x64xf32> -> vector<8x64xf32>
    %c0_3 = arith.constant 0 : index
    %c0_4 = arith.constant 0 : index
    %3 = vector.load %arg3[%c0_3, %c0_4] : memref<1x64xf32, #tpu.memory_space<vmem>>, vector<1x64xf32>
    %4 = vector.broadcast %3 : vector<1x64xf32> to vector<8x64xf32>
    %5 = arith.addf %2, %4 : vector<8x64xf32>
    %cst_5 = arith.constant 0.000000e+00 : f32
    %6 = vector.broadcast %cst_5 : f32 to vector<8x64xf32>
    %7 = arith.maximumf %5, %6 : vector<8x64xf32>
    %c0_6 = arith.constant 0 : index
    %c0_7 = arith.constant 0 : index
    %8 = vector.load %arg4[%c0_6, %c0_7] : memref<64x64xf32, #tpu.memory_space<vmem>>, vector<64x64xf32>
    %cst_8 = arith.constant dense<0.000000e+00> : vector<8x64xf32>
    %9 = tpu.matmul %7, %8, %cst_8 {dimension_numbers = #tpu.dot_dimension_numbers<[1], [0], [0], [1], [0, 0, 1, 1], [], []>} : vector<8x64xf32>, vector<64x64xf32>, vector<8x64xf32> -> vector<8x64xf32>
    %c0_9 = arith.constant 0 : index
    %c0_10 = arith.constant 0 : index
    %10 = vector.load %arg5[%c0_9, %c0_10] : memref<1x64xf32, #tpu.memory_space<vmem>>, vector<1x64xf32>
    %11 = vector.broadcast %10 : vector<1x64xf32> to vector<8x64xf32>
    %12 = arith.addf %9, %11 : vector<8x64xf32>
    %cst_11 = arith.constant 0.000000e+00 : f32
    %13 = vector.broadcast %cst_11 : f32 to vector<8x64xf32>
    %14 = arith.maximumf %12, %13 : vector<8x64xf32>
    %c0_12 = arith.constant 0 : index
    %c0_13 = arith.constant 0 : index
    %15 = vector.load %arg6[%c0_12, %c0_13] : memref<64x128xf32, #tpu.memory_space<vmem>>, vector<64x128xf32>
    %cst_14 = arith.constant dense<0.000000e+00> : vector<8x128xf32>
    %16 = tpu.matmul %14, %15, %cst_14 {dimension_numbers = #tpu.dot_dimension_numbers<[1], [0], [0], [1], [0, 0, 1, 1], [], []>} : vector<8x64xf32>, vector<64x128xf32>, vector<8x128xf32> -> vector<8x128xf32>
    %c0_15 = arith.constant 0 : index
    %c0_16 = arith.constant 0 : index
    %17 = vector.load %arg7[%c0_15, %c0_16] : memref<1x128xf32, #tpu.memory_space<vmem>>, vector<1x128xf32>
    %18 = vector.broadcast %17 : vector<1x128xf32> to vector<8x128xf32>
    %19 = arith.addf %16, %18 : vector<8x128xf32>
    %20 = tpu.iota {dimensions = array<i32: 1>} : vector<1x128xi32>
    %c64_i32 = arith.constant 64 : i32
    %21 = vector.broadcast %c64_i32 : i32 to vector<1x128xi32>
    %22 = arith.cmpi slt, %20, %21 : vector<1x128xi32>
    %23 = arith.negf %19 : vector<8x128xf32>
    %24 = math.exp %23 : vector<8x128xf32>
    %cst_17 = arith.constant 1.000000e+00 : f32
    %25 = vector.broadcast %cst_17 : f32 to vector<8x128xf32>
    %26 = arith.addf %25, %24 : vector<8x128xf32>
    %27 = arith.divf %25, %26 : vector<8x128xf32>
    %cst_18 = arith.constant 1.500000e+00 : f32
    %28 = vector.broadcast %cst_18 : f32 to vector<8x128xf32>
    %29 = arith.mulf %28, %27 : vector<8x128xf32>
    %30 = vector.shape_cast %22 : vector<1x128xi1> to vector<1x128xi1>
    %31 = vector.broadcast %30 : vector<1x128xi1> to vector<8x128xi1>
    %32 = arith.select %31, %19, %29 : vector<8x128xi1>, vector<8x128xf32>
    %c0_19 = arith.constant 0 : index
    %c0_20 = arith.constant 0 : index
    %33 = vector.load %arg8[%c0_19, %c0_20] : memref<8x128xf32, #tpu.memory_space<vmem>>, vector<8x128xf32>
    tpu.vector_store %arg8[%c0_19, %c0_20], %32 {strides = array<i32>} : memref<8x128xf32, #tpu.memory_space<vmem>>, vector<8x128xf32>,
    return
  }
  func.func @transform_0(%arg0: i32) -> (i32, i32) {
    %c0_i32 = arith.constant 0 : i32
    %c0_i32_0 = arith.constant 0 : i32
    return %arg0, %c0_i32 : i32, i32
  }
  func.func @transform_1(%arg0: i32) -> (i32, i32) {
    %c0_i32 = arith.constant 0 : i32
    %c0_i32_0 = arith.constant 0 : i32
    %c0_i32_1 = arith.constant 0 : i32
    return %c0_i32, %c0_i32_0 : i32, i32
  }
  func.func @transform_2(%arg0: i32) -> (i32, i32) {
    %c0_i32 = arith.constant 0 : i32
    %c0_i32_0 = arith.constant 0 : i32
    %c0_i32_1 = arith.constant 0 : i32
    return %c0_i32, %c0_i32_0 : i32, i32
  }
  func.func @transform_3(%arg0: i32) -> (i32, i32) {
    %c0_i32 = arith.constant 0 : i32
    %c0_i32_0 = arith.constant 0 : i32
    %c0_i32_1 = arith.constant 0 : i32
    return %c0_i32, %c0_i32_0 : i32, i32
  }
  func.func @transform_4(%arg0: i32) -> (i32, i32) {
    %c0_i32 = arith.constant 0 : i32
    %c0_i32_0 = arith.constant 0 : i32
    %c0_i32_1 = arith.constant 0 : i32
    return %c0_i32, %c0_i32_0 : i32, i32
  }
  func.func @transform_5(%arg0: i32) -> (i32, i32) {
    %c0_i32 = arith.constant 0 : i32
    %c0_i32_0 = arith.constant 0 : i32
    %c0_i32_1 = arith.constant 0 : i32
    return %c0_i32, %c0_i32_0 : i32, i32
  }
  func.func @transform_6(%arg0: i32) -> (i32, i32) {
    %c0_i32 = arith.constant 0 : i32
    %c0_i32_0 = arith.constant 0 : i32
    %c0_i32_1 = arith.constant 0 : i32
    return %c0_i32, %c0_i32_0 : i32, i32
  }
  func.func @transform_7(%arg0: i32) -> (i32, i32) {
    %c0_i32 = arith.constant 0 : i32
    %c0_i32_0 = arith.constant 0 : i32
    return %arg0, %c0_i32 : i32, i32
  }
}

</mosaic_0001>

<llo_original>
// kernel: tpu_custom_call.1
$region0: #{tpu_custom_call.1}
  #allocation0 [shape = 'u32[]', space=smem, size = 0x4, offset = 0x4, fixed_abs, tag = 'smem constant byte address 0x4 - core index']
  #allocation1 [shape = 'u32[144,128]{1,0:T(1,128)}', space=vmem, size = 0x12000, scoped, tag = 'internal scratch']
  %s0 = inlined_call_operand.hbm [shape: f32[8,35], index: 0, kind: input, shape index: {}]
  %s1 = inlined_call_operand.hbm [shape: f32[35,64], index: 1, kind: input, shape index: {}]
  %s2 = inlined_call_operand.vmem [shape: f32[1,64], index: 2, kind: input, shape index: {}]
  %s3 = inlined_call_operand.hbm [shape: f32[64,64], index: 3, kind: input, shape index: {}]
  %s4 = inlined_call_operand.vmem [shape: f32[1,64], index: 4, kind: input, shape index: {}]
  %s5 = inlined_call_operand.hbm [shape: f32[64,128], index: 5, kind: input, shape index: {}]
  %s6 = inlined_call_operand.vmem [shape: f32[1,128], index: 6, kind: input, shape index: {}]
  %s7 = inlined_call_operand.hbm [shape: f32[8,128], index: 7, kind: output, shape index: {}]
  %s8 = sld [smem:[#allocation0]]
  $region54: #{tpu_custom_call.1} parent=0
    _
  %s10 = ssub.s32 1, %s8
  %s11 = scalar_select 0, %s10, %s8
  $region1: #{tpu_custom_call.1} parent=0
    #allocation2 [shape = 'u8[4096]{0}', space=vmem, size = 0x1000, scoped, tag = 'input window, operand 0, single buffered']
    #allocation3 [shape = 's32[1]{0}', space=sflag, size = 0x4, scoped, tag = 'scoped memory for tpu_custom_call.1']
    #allocation4 [shape = 's32[1]{0}', space=sflag, size = 0x4, scoped, tag = 'scoped memory for tpu_custom_call.1']
    #allocation5 [shape = 'u8[20480]{0}', space=vmem, size = 0x5000, scoped, tag = 'input window, operand 1, single buffered']
    #allocation6 [shape = 's32[1]{0}', space=sflag, size = 0x4, scoped, tag = 'scoped memory for tpu_custom_call.1']
    #allocation7 [shape = 'u8[32768]{0}', space=vmem, size = 0x8000, scoped, tag = 'input window, operand 3, single buffered']
    #allocation8 [shape = 'u8[32768]{0}', space=vmem, size = 0x8000, scoped, tag = 'input window, operand 5, single buffered']
    #allocation9 [shape = 's32[1]{0}', space=sflag, size = 0x4, scoped, tag = 'scoped memory for tpu_custom_call.1']
    #allocation10 [shape = 'u8[4096]{0}', space=vmem, size = 0x1000, scoped, tag = 'output window, operand 0, single buffered']
    %12 = vsyncpa [#allocation3], 0
    %13 = vsyncpa [#allocation6], 0
    %14 = vsyncpa [#allocation9], 0
    %15 = vsyncpa [#allocation4], 0
    // Predicated region
    $region2: #{tpu_custom_call.1} parent=1 // pred_check
      _
    $region3: #{tpu_custom_call.1} parent=1 // pred_check_branch
      %17 = sbr.rel (0) target = $region5
    $region4: #{tpu_custom_call.1} parent=1 // pred_region
      %s19 = ssub.s32 128, 128
      %20 = vsyncadd [#allocation3], %s19
      %s22 = sshll.u32 [#allocation2], 4
      %s23 = int_to_ptr.vmem [resolvable:$true] %s22
      %25 = dma.hbm_to_vmem [thread:$0]  %s0, 128, %s23, [#allocation3]
    $region5: #{tpu_custom_call.1} parent=1 // pred_fallthru
      _
    // Predicated region
    $region6: #{tpu_custom_call.1} parent=1 // pred_check
      _
    $region7: #{tpu_custom_call.1} parent=1 // pred_check_branch
      %27 = sbr.rel (0) target = $region9
    $region8: #{tpu_custom_call.1} parent=1 // pred_region
      %s29 = ssub.s32 640, 640
      %30 = vsyncadd [#allocation6], %s29
      %s31 = sshll.u32 [#allocation5], 4
      %s32 = int_to_ptr.vmem [resolvable:$true] %s31
      %37 = dma.hbm_to_vmem [thread:$0]  %s1, 640, %s32, [#allocation6], 128, 128, 8
    $region9: #{tpu_custom_call.1} parent=1 // pred_fallthru
      _
    // Predicated region
    $region10: #{tpu_custom_call.1} parent=1 // pred_check
      _
    $region11: #{tpu_custom_call.1} parent=1 // pred_check_branch
      %39 = sbr.rel (0) target = $region13
    $region12: #{tpu_custom_call.1} parent=1 // pred_region
      _
    $region13: #{tpu_custom_call.1} parent=1 // pred_fallthru
      _
    // Predicated region
    $region14: #{tpu_custom_call.1} parent=1 // pred_check
      _
    $region15: #{tpu_custom_call.1} parent=1 // pred_check_branch
      %41 = sbr.rel (0) target = $region17
    $region16: #{tpu_custom_call.1} parent=1 // pred_region
      %s43 = ssub.s32 1024, 1024
      %44 = vsyncadd [#allocation6], %s43
      %s45 = sshll.u32 [#allocation7], 4
      %s46 = int_to_ptr.vmem [resolvable:$true] %s45
      %51 = dma.hbm_to_vmem [thread:$0]  %s3, 1024, %s46, [#allocation6], 128, 128, 8
    $region17: #{tpu_custom_call.1} parent=1 // pred_fallthru
      _
    // Predicated region
    $region18: #{tpu_custom_call.1} parent=1 // pred_check
      _
    $region19: #{tpu_custom_call.1} parent=1 // pred_check_branch
      %53 = sbr.rel (0) target = $region21
    $region20: #{tpu_custom_call.1} parent=1 // pred_region
      _
    $region21: #{tpu_custom_call.1} parent=1 // pred_fallthru
      _
    // Predicated region
    $region22: #{tpu_custom_call.1} parent=1 // pred_check
      _
    $region23: #{tpu_custom_call.1} parent=1 // pred_check_branch
      %55 = sbr.rel (0) target = $region25
    $region24: #{tpu_custom_call.1} parent=1 // pred_region
      %s57 = ssub.s32 1024, 1024
      %58 = vsyncadd [#allocation9], %s57
      %s59 = sshll.u32 [#allocation8], 4
      %s60 = int_to_ptr.vmem [resolvable:$true] %s59
      %65 = dma.hbm_to_vmem [thread:$0]  %s5, 1024, %s60, [#allocation9], 128, 128, 8
    $region25: #{tpu_custom_call.1} parent=1 // pred_fallthru
      _
    // Predicated region
    $region26: #{tpu_custom_call.1} parent=1 // pred_check
      _
    $region27: #{tpu_custom_call.1} parent=1 // pred_check_branch
      %67 = sbr.rel (0) target = $region29
    $region28: #{tpu_custom_call.1} parent=1 // pred_region
      _
    $region29: #{tpu_custom_call.1} parent=1 // pred_fallthru
      _
    // Predicated region
    $region30: #{tpu_custom_call.1} parent=1 // pred_check
      _
    $region31: #{tpu_custom_call.1} parent=1 // pred_check_branch
      %69 = sbr.rel (0) target = $region33
    $region32: #{tpu_custom_call.1} parent=1 // pred_region
      %70 = dma.done [#allocation3], 128
    $region33: #{tpu_custom_call.1} parent=1 // pred_fallthru
      _
    // Predicated region
    $region34: #{tpu_custom_call.1} parent=1 // pred_check
      _
    $region35: #{tpu_custom_call.1} parent=1 // pred_check_branch
      %72 = sbr.rel (0) target = $region37
    $region36: #{tpu_custom_call.1} parent=1 // pred_region
      %73 = dma.done [#allocation6], 640
    $region37: #{tpu_custom_call.1} parent=1 // pred_fallthru
      _
    // Predicated region
    $region38: #{tpu_custom_call.1} parent=1 // pred_check
      _
    $region39: #{tpu_custom_call.1} parent=1 // pred_check_branch
      %75 = sbr.rel (0) target = $region41
    $region40: #{tpu_custom_call.1} parent=1 // pred_region
      %76 = dma.done [#allocation6], 1024
    $region41: #{tpu_custom_call.1} parent=1 // pred_fallthru
      _
    // Predicated region
    $region42: #{tpu_custom_call.1} parent=1 // pred_check
      _
    $region43: #{tpu_custom_call.1} parent=1 // pred_check_branch
      %78 = sbr.rel (0) target = $region45
    $region44: #{tpu_custom_call.1} parent=1 // pred_region
      %79 = dma.done [#allocation9], 1024
    $region45: #{tpu_custom_call.1} parent=1 // pred_fallthru
      _
    %v80 = vld [vmem:[#allocation2] sm:$0xff]
    %v81 = vld [vmem:[#allocation5] sm:$0xff]
    %v82 = vld [vmem:[#allocation5 + $0x8] sm:$0xff]
    %v83 = vld [vmem:[#allocation5 + $0x10] sm:$0xff]
    %v84 = vld [vmem:[#allocation5 + $0x18] sm:$0xff]
    %v85 = vld [vmem:[#allocation5 + $0x20] sm:$0x7]
    %v86 = vld [vmem:[%s2] sm:$0x1]
    %v88 = vlaneseq
    %v89 = vshrl.u32 %v88, 7
    %v90 = vsub.s32 0, %v89
    %v91 = vrot.slane %v86, %v90
    %vm93 = vcmask 285696
    %v95 = vsel %vm93, %v80, 0
    %vm97 = vcmask 1042432
    %v99 = vsel %vm97, %v85, 0
    %101 = vmatprep.subr.mxu0 0.0
    %102 = vmatpush1.msra.mxu0 %v81
    %103 = vmatprep.subr.mxu0 0.0
    %104 = vmatpush1.msra.mxu0 %v82
    %105 = vmatprep.subr.mxu0 0.0
    %106 = vmatpush1.msra.mxu0 %v83
    %107 = vmatprep.subr.mxu0 0.0
    %108 = vmatpush1.msra.mxu0 %v84
    %109 = vmatprep.subr.mxu0 0.0
    %110 = vmatpush1.msra.mxu0 %v99
    %111 = vmatprep.subr.mxu0 0.0
    %112 = vmatpush1.msra.mxu0 0.0
    %113 = vmatprep.subr.mxu0 0.0
    %114 = vmatpush1.msra.mxu0 0.0
    %115 = vmatprep.subr.mxu0 0.0
    %116 = vmatpush1.msra.mxu0 0.0
    %117 = vmatprep.subr.mxu0 0.0
    %118 = vmatpush1.msra.mxu0 0.0
    %119 = vmatprep.subr.mxu0 0.0
    %120 = vmatpush1.msra.mxu0 0.0
    %121 = vmatprep.subr.mxu0 0.0
    %122 = vmatpush1.msra.mxu0 0.0
    %123 = vmatprep.subr.mxu0 0.0
    %124 = vmatpush1.msra.mxu0 0.0
    %125 = vmatprep.subr.mxu0 0.0
    %126 = vmatpush1.msra.mxu0 0.0
    %127 = vmatprep.subr.mxu0 0.0
    %128 = vmatpush1.msra.mxu0 0.0
    %129 = vmatprep.subr.mxu0 0.0
    %130 = vmatpush1.msra.mxu0 0.0
    %131 = vmatprep.subr.mxu0 0.0
    %132 = vmatpush1.msra.mxu0 0.0
    %133 = vmatprep.subr.mxu0 0.0
    %134 = vmatpush1.msra.mxu0 0.0
    %135 = vmatprep.subr.mxu0 0.0
    %136 = vmatpush1.msra.mxu0 0.0
    %137 = vmatprep.subr.mxu0 0.0
    %138 = vmatpush1.msra.mxu0 0.0
    %139 = vmatprep.subr.mxu0 0.0
    %140 = vmatpush1.msra.mxu0 0.0
    %141 = vmatprep.subr.mxu0 0.0
    %142 = vmatpush1.msra.mxu0 0.0
    %143 = vmatprep.subr.mxu0 0.0
    %144 = vmatpush1.msra.mxu0 0.0
    %145 = vmatprep.subr.mxu0 0.0
    %146 = vmatpush1.msra.mxu0 0.0
    %147 = vmatprep.subr.mxu0 0.0
    %148 = vmatpush1.msra.mxu0 0.0
    %149 = vmatprep.subr.mxu0 0.0
    %150 = vmatpush1.msra.mxu0 0.0
    %151 = vmatprep.subr.mxu0 0.0
    %152 = vmatpush1.msra.mxu0 0.0
    %153 = vmatprep.subr.mxu0 0.0
    %154 = vmatpush1.msra.mxu0 0.0
    %155 = vmatprep.subr.mxu0 0.0
    %156 = vmatpush1.msra.mxu0 0.0
    %157 = vmatprep.subr.mxu0 0.0
    %158 = vmatpush1.msra.mxu0 0.0
    %159 = vmatprep.subr.mxu0 0.0
    %160 = vmatpush1.msra.mxu0 0.0
    %161 = vmatprep.subr.mxu0 0.0
    %162 = vmatpush1.msra.mxu0 0.0
    %163 = vmatprep.subr.mxu0 0.0
    %164 = vmatpush1.msra.mxu0 0.0
    %165 = vmatprep.mubr.f32.mxu0 0.0
    %166 = vmatmul.mubr.f32.gmra.mrb[0].mxu0 %v95
    %v167 = vpop.f32.mrb[0].mxu0
    %v168 = vadd.f32 %v91, %v167
    %v169 = vpop.f32.mrb[0].mxu0
    %170 = vdwg.mxu0
    %v171 = vmax.f32 %v168, 0.0
    %v172 = vld [vmem:[#allocation7] sm:$0xff]
    %v173 = vld [vmem:[#allocation7 + $0x8] sm:$0xff]
    %v174 = vld [vmem:[#allocation7 + $0x10] sm:$0xff]
    %v175 = vld [vmem:[#allocation7 + $0x18] sm:$0xff]
    %v176 = vld [vmem:[#allocation7 + $0x20] sm:$0xff]
    %v177 = vld [vmem:[#allocation7 + $0x28] sm:$0xff]
    %v178 = vld [vmem:[#allocation7 + $0x30] sm:$0xff]
    %v179 = vld [vmem:[#allocation7 + $0x38] sm:$0xff]
    %v180 = vld [vmem:[%s4] sm:$0x1]
    %v182 = vlaneseq
    %v183 = vshrl.u32 %v182, 7
    %v184 = vsub.s32 0, %v183
    %v185 = vrot.slane %v180, %v184
    %vm187 = vcmask 523264
    %v189 = vsel %vm187, %v171, 0
    %191 = vmatprep.subr.mxu0 0.0
    %192 = vmatpush1.msra.mxu0 %v172
    %193 = vmatprep.subr.mxu0 0.0
    %194 = vmatpush1.msra.mxu0 %v173
    %195 = vmatprep.subr.mxu0 0.0
    %196 = vmatpush1.msra.mxu0 %v174
    %197 = vmatprep.subr.mxu0 0.0
    %198 = vmatpush1.msra.mxu0 %v175
    %199 = vmatprep.subr.mxu0 0.0
    %200 = vmatpush1.msra.mxu0 %v176
    %201 = vmatprep.subr.mxu0 0.0
    %202 = vmatpush1.msra.mxu0 %v177
    %203 = vmatprep.subr.mxu0 0.0
    %204 = vmatpush1.msra.mxu0 %v178
    %205 = vmatprep.subr.mxu0 0.0
    %206 = vmatpush1.msra.mxu0 %v179
    %207 = vmatprep.subr.mxu0 0.0
    %208 = vmatpush1.msra.mxu0 0.0
    %209 = vmatprep.subr.mxu0 0.0
    %210 = vmatpush1.msra.mxu0 0.0
    %211 = vmatprep.subr.mxu0 0.0
    %212 = vmatpush1.msra.mxu0 0.0
    %213 = vmatprep.subr.mxu0 0.0
    %214 = vmatpush1.msra.mxu0 0.0
    %215 = vmatprep.subr.mxu0 0.0
    %216 = vmatpush1.msra.mxu0 0.0
    %217 = vmatprep.subr.mxu0 0.0
    %218 = vmatpush1.msra.mxu0 0.0
    %219 = vmatprep.subr.mxu0 0.0
    %220 = vmatpush1.msra.mxu0 0.0
    %221 = vmatprep.subr.mxu0 0.0
    %222 = vmatpush1.msra.mxu0 0.0
    %223 = vmatprep.subr.mxu0 0.0
    %224 = vmatpush1.msra.mxu0 0.0
    %225 = vmatprep.subr.mxu0 0.0
    %226 = vmatpush1.msra.mxu0 0.0
    %227 = vmatprep.subr.mxu0 0.0
    %228 = vmatpush1.msra.mxu0 0.0
    %229 = vmatprep.subr.mxu0 0.0
    %230 = vmatpush1.msra.mxu0 0.0
    %231 = vmatprep.subr.mxu0 0.0
    %232 = vmatpush1.msra.mxu0 0.0
    %233 = vmatprep.subr.mxu0 0.0
    %234 = vmatpush1.msra.mxu0 0.0
    %235 = vmatprep.subr.mxu0 0.0
    %236 = vmatpush1.msra.mxu0 0.0
    %237 = vmatprep.subr.mxu0 0.0
    %238 = vmatpush1.msra.mxu0 0.0
    %239 = vmatprep.subr.mxu0 0.0
    %240 = vmatpush1.msra.mxu0 0.0
    %241 = vmatprep.subr.mxu0 0.0
    %242 = vmatpush1.msra.mxu0 0.0
    %243 = vmatprep.subr.mxu0 0.0
    %244 = vmatpush1.msra.mxu0 0.0
    %245 = vmatprep.subr.mxu0 0.0
    %246 = vmatpush1.msra.mxu0 0.0
    %247 = vmatprep.subr.mxu0 0.0
    %248 = vmatpush1.msra.mxu0 0.0
    %249 = vmatprep.subr.mxu0 0.0
    %250 = vmatpush1.msra.mxu0 0.0
    %251 = vmatprep.subr.mxu0 0.0
    %252 = vmatpush1.msra.mxu0 0.0
    %253 = vmatprep.subr.mxu0 0.0
    %254 = vmatpush1.msra.mxu0 0.0
    %255 = vmatprep.mubr.f32.mxu0 0.0
    %256 = vmatmul.mubr.f32.gmra.mrb[0].mxu0 %v189
    %v257 = vpop.f32.mrb[0].mxu0
    %v258 = vadd.f32 %v185, %v257
    %v259 = vpop.f32.mrb[0].mxu0
    %260 = vdwg.mxu0
    %v261 = vmax.f32 %v258, 0.0
    %v262 = vld [vmem:[#allocation8] sm:$0xff]
    %v263 = vld [vmem:[#allocation8 + $0x8] sm:$0xff]
    %v264 = vld [vmem:[#allocation8 + $0x10] sm:$0xff]
    %v265 = vld [vmem:[#allocation8 + $0x18] sm:$0xff]
    %v266 = vld [vmem:[#allocation8 + $0x20] sm:$0xff]
    %v267 = vld [vmem:[#allocation8 + $0x28] sm:$0xff]
    %v268 = vld [vmem:[#allocation8 + $0x30] sm:$0xff]
    %v269 = vld [vmem:[#allocation8 + $0x38] sm:$0xff]
    %v270 = vld [vmem:[%s6] sm:$0x1]
    %v272 = vlaneseq
    %v273 = vshrl.u32 %v272, 7
    %v274 = vsub.s32 0, %v273
    %v275 = vrot.slane %v270, %v274
    %v278 = vsel %vm187, %v261, 0
    %280 = vmatprep.subr.mxu0 0.0
    %281 = vmatpush1.msra.mxu0 %v262
    %282 = vmatprep.subr.mxu0 0.0
    %283 = vmatpush1.msra.mxu0 %v263
    %284 = vmatprep.subr.mxu0 0.0
    %285 = vmatpush1.msra.mxu0 %v264
    %286 = vmatprep.subr.mxu0 0.0
    %287 = vmatpush1.msra.mxu0 %v265
    %288 = vmatprep.subr.mxu0 0.0
    %289 = vmatpush1.msra.mxu0 %v266
    %290 = vmatprep.subr.mxu0 0.0
    %291 = vmatpush1.msra.mxu0 %v267
    %292 = vmatprep.subr.mxu0 0.0
    %293 = vmatpush1.msra.mxu0 %v268
    %294 = vmatprep.subr.mxu0 0.0
    %295 = vmatpush1.msra.mxu0 %v269
    %296 = vmatprep.subr.mxu0 0.0
    %297 = vmatpush1.msra.mxu0 0.0
    %298 = vmatprep.subr.mxu0 0.0
    %299 = vmatpush1.msra.mxu0 0.0
    %300 = vmatprep.subr.mxu0 0.0
    %301 = vmatpush1.msra.mxu0 0.0
    %302 = vmatprep.subr.mxu0 0.0
    %303 = vmatpush1.msra.mxu0 0.0
    %304 = vmatprep.subr.mxu0 0.0
    %305 = vmatpush1.msra.mxu0 0.0
    %306 = vmatprep.subr.mxu0 0.0
    %307 = vmatpush1.msra.mxu0 0.0
    %308 = vmatprep.subr.mxu0 0.0
    %309 = vmatpush1.msra.mxu0 0.0
    %310 = vmatprep.subr.mxu0 0.0
    %311 = vmatpush1.msra.mxu0 0.0
    %312 = vmatprep.subr.mxu0 0.0
    %313 = vmatpush1.msra.mxu0 0.0
    %314 = vmatprep.subr.mxu0 0.0
    %315 = vmatpush1.msra.mxu0 0.0
    %316 = vmatprep.subr.mxu0 0.0
    %317 = vmatpush1.msra.mxu0 0.0
    %318 = vmatprep.subr.mxu0 0.0
    %319 = vmatpush1.msra.mxu0 0.0
    %320 = vmatprep.subr.mxu0 0.0
    %321 = vmatpush1.msra.mxu0 0.0
    %322 = vmatprep.subr.mxu0 0.0
    %323 = vmatpush1.msra.mxu0 0.0
    %324 = vmatprep.subr.mxu0 0.0
    %325 = vmatpush1.msra.mxu0 0.0
    %326 = vmatprep.subr.mxu0 0.0
    %327 = vmatpush1.msra.mxu0 0.0
    %328 = vmatprep.subr.mxu0 0.0
    %329 = vmatpush1.msra.mxu0 0.0
    %330 = vmatprep.subr.mxu0 0.0
    %331 = vmatpush1.msra.mxu0 0.0
    %332 = vmatprep.subr.mxu0 0.0
    %333 = vmatpush1.msra.mxu0 0.0
    %334 = vmatprep.subr.mxu0 0.0
    %335 = vmatpush1.msra.mxu0 0.0
    %336 = vmatprep.subr.mxu0 0.0
    %337 = vmatpush1.msra.mxu0 0.0
    %338 = vmatprep.subr.mxu0 0.0
    %339 = vmatpush1.msra.mxu0 0.0
    %340 = vmatprep.subr.mxu0 0.0
    %341 = vmatpush1.msra.mxu0 0.0
    %342 = vmatprep.subr.mxu0 0.0
    %343 = vmatpush1.msra.mxu0 0.0
    %344 = vmatprep.mubr.f32.mxu0 0.0
    %345 = vmatmul.mubr.f32.gmra.mrb[0].mxu0 %v278
    %v346 = vpop.f32.mrb[0].mxu0
    %v347 = vadd.f32 %v275, %v346
    %v348 = vpop.f32.mrb[0].mxu0
    %349 = vdwg.mxu0
    %v350 = vlaneseq
    %v351 = vand.u32 %v350, 127
    %vm352 = vcmp.lt.s32.totalorder %v351, 64
    %v353 = vxor.u32 %v347, 2147483648
    %v354 = vmul.f32 %v353, 1.442695
    %v355 = vpow.pop %v354
    %v356 = vadd.f32 %v355, 1.0
    %v357 = vrcp.pop %v356
    %v358 = vmul.f32 1.0, %v357
    %v359 = vmul.f32 %v358, 1.5
    %v360 = vsel %vm352, 1, 0
    %vm361 = vcmp.eq.s32.totalorder %v360, 1
    %v362 = vsel %vm361, %v347, %v359
    %363 = vst [vmem:[#allocation10] sm:$0xff] %v362
    // Predicated region
    $region46: #{tpu_custom_call.1} parent=1 // pred_check
      _
    $region47: #{tpu_custom_call.1} parent=1 // pred_check_branch
      %365 = sbr.rel (0) target = $region49
    $region48: #{tpu_custom_call.1} parent=1 // pred_region
      %s367 = ssub.s32 128, 128
      %368 = vsyncadd [#allocation4], %s367
      %s370 = sshll.u32 [#allocation10], 4
      %s371 = int_to_ptr.vmem [resolvable:$true] %s370
      %373 = dma.vmem_to_hbm [thread:$0]  %s371, 128, %s7, [#allocation4]
    $region49: #{tpu_custom_call.1} parent=1 // pred_fallthru
      _
    // Predicated region
    $region50: #{tpu_custom_call.1} parent=1 // pred_check
      _
    $region51: #{tpu_custom_call.1} parent=1 // pred_check_branch
      %375 = sbr.rel (0) target = $region53
    $region52: #{tpu_custom_call.1} parent=1 // pred_region
      %376 = dma.done [#allocation4], 128
    $region53: #{tpu_custom_call.1} parent=1 // pred_fallthru
      _
    %377 = vsyncpa [#allocation3], 1
    %378 = vsyncpa [#allocation6], 1
    %379 = vsyncpa [#allocation9], 1
    %380 = vsyncpa [#allocation4], 1

</llo_original>
